<compile_context>
chip_gen: v7x
topology: tpu7x:2x2x1
jax: 0.10.0
libtpu: 0.0.40
codegen_flags: <defaults>
</compile_context>

<pallas_src>
import functools

import jax
import jax.numpy as jnp
from jax.experimental import pallas as pl
from jax.experimental.pallas import tpu as pltpu


def attention_cell_kernel(
    bH_ref, h_ref, c_ref, oh_ref,
    wi2h_ref, wh2h_ref, bh2h_ref, wscore_ref,
    wc_ref, we_ref, whg_ref, bgates_ref,
    hnew_ref, cnew_ref, alpha_ref,
    *, ew_dtype,
):
    Bb, T, I = bH_ref.shape
    H = h_ref.shape[1]
    mm_dt = wi2h_ref.dtype                # MXU operand dtype (f32 or bf16)

    bH = bH_ref[...]                      # (Bb, T, I)  in mm_dt
    h = h_ref[...]                        # (Bb, H)     f32
    c = c_ref[...]                        # (Bb, H)     f32
    oh = oh_ref[...]                      # (Bb, E)     f32

    # --- attention scores ---------------------------------------------------
    # batch_H_proj = i2h(batch_H) -> (Bb, T, H): one MXU matmul, f32 accumulate.
    proj = jnp.dot(
        bH.reshape(Bb * T, I).astype(mm_dt), wi2h_ref[...],
        preferred_element_type=jnp.float32).reshape(Bb, T, H)

    # prev_hidden_proj = h2h(h) -> (Bb, H)
    hproj = jnp.dot(
        h.astype(mm_dt), wh2h_ref[...],
        preferred_element_type=jnp.float32) + bh2h_ref[...]

    # tanh on the (Bb,T,H) intermediate; ew_dtype=bf16 halves EUP/vreg cost on
    # v6e/v7x (keep f32 on v5e, which has no bf16 VPU/EUP).
    t = jnp.tanh((proj + hproj[:, None, :]).astype(ew_dtype))

    # N=1 "score matmul" as VPU broadcast-multiply + XLU lane reduce
    # (no MXU push wasted on a 1-wide result); accumulate in f32.
    w_row = wscore_ref[...].reshape(1, 1, H).astype(ew_dtype)
    e = jnp.sum((t * w_row).astype(jnp.float32), axis=-1)          # (Bb, T)

    # softmax over the time axis (f32 on VPU/EUP)
    e_max = jnp.max(e, axis=1, keepdims=True)
    ex = jnp.exp(e - e_max)
    alpha = ex / jnp.sum(ex, axis=1, keepdims=True)                # (Bb, T) f32

    # --- context --------------------------------------------------------------
    # context = bmm(alpha^T, batch_H).squeeze(1) done on the VPU (broadcast
    # multiply) + XLU sublane reduce over T.  alpha stays f32; avoids B
    # serialized M=1 MXU pushes.
    context = jnp.sum(alpha[:, :, None] * bH.astype(jnp.float32), axis=1)  # (Bb, I)

    # --- fused LSTMCell (no lane-axis concatenate) ----------------------------
    # gates = context @ W_ih[:I] + onehot @ W_ih[I:] + h @ W_hh + (b_ih + b_hh)
    gates = jnp.dot(context.astype(mm_dt), wc_ref[...],
                    preferred_element_type=jnp.float32)
    gates = gates + jnp.dot(oh.astype(mm_dt), we_ref[...],
                            preferred_element_type=jnp.float32)
    gates = gates + jnp.dot(h.astype(mm_dt), whg_ref[...],
                            preferred_element_type=jnp.float32)
    gates = gates + bgates_ref[...]                                # (Bb, 4H) f32

    i_g = jax.nn.sigmoid(gates[:, 0 * H:1 * H])
    f_g = jax.nn.sigmoid(gates[:, 1 * H:2 * H])
    g_g = jnp.tanh(gates[:, 2 * H:3 * H])
    o_g = jax.nn.sigmoid(gates[:, 3 * H:4 * H])

    c_new = f_g * c + i_g * g_g
    h_new = o_g * jnp.tanh(c_new)

    hnew_ref[...] = h_new
    cnew_ref[...] = c_new
    # Lane-dense (Bb, T) store; the (B, T, 1) reshape happens in the wrapper.
    alpha_ref[...] = alpha


def _pick_batch_block(B, T, I, H, mm_itemsize, budget_bytes=8 << 20):
    """Largest batch tile (multiple of 8 that divides B) within a conservative
    VMEM budget — keeps the double-buffered batch_H tile plus the f32 (T,H)
    intermediates well under every generation's scoped-VMEM limit."""
    per_row = 2 * T * I * mm_itemsize + 4 * T * H * 4 + 16 * H * 4
    bb = int(budget_bytes // max(per_row, 1))
    if bb >= B:
        return B
    bb = max(8, (bb // 8) * 8)
    while bb > 8 and B % bb:
        bb -= 8
    return bb if B % bb == 0 else B


def attention_cell(batch_H, prev_h, prev_c, char_onehots, params,
                   matmul_dtype=jnp.float32, ew_dtype=jnp.float32,
                   batch_block=None):
    """Single AttentionCell step.

    matmul_dtype=jnp.bfloat16 is the recommended production setting on ALL TPU
    generations (bf16 MXU operands, f32 accumulation; halves batch_H / weight
    DMA bytes).  ew_dtype=jnp.bfloat16 additionally runs the (B,T,H) tanh in
    bf16 — use on v6e/v7x only.  Defaults are f32 for exact reference parity.
    """
    B, T, I = batch_H.shape
    H = prev_h.shape[1]
    E = char_onehots.shape[1]
    mm_dt = jnp.dtype(matmul_dtype)

    # One-time weight preprocessing (slices / bias fuse / casts).
    # TODO(synk): in the enclosing decoder loop these casts and — far more
    # importantly — the weight + batch_H DMAs should be hoisted so they happen
    # once per sequence, not once per decode step.
    w_ih = params["w_ih"]                               # (I+E, 4H)
    w_c = w_ih[:I].astype(mm_dt)                        # context rows of W_ih
    w_e = w_ih[I:].astype(mm_dt)                        # one-hot rows of W_ih
    w_hg = params["w_hh"].astype(mm_dt)                 # (H, 4H)
    b_gates = params["b_ih"] + params["b_hh"]           # (1, 4H) f32
    w_score_row = params["w_score"].T                   # (1, H)  f32
    w_i2h = params["w_i2h"].astype(mm_dt)               # (I, H)
    w_h2h = params["w_h2h"].astype(mm_dt)               # (H, H)
    batch_H_mm = batch_H.astype(mm_dt)

    # TODO(synk): for production vocab sizes, pass char indices (scalar
    # prefetch) and gather the E rows of W_ih instead of the (B, E) one-hot
    # matmul; trivial at E=16 so kept as-is to preserve forward semantics.

    Bb = _pick_batch_block(B, T, I, H, mm_dt.itemsize) if batch_block is None \
        else batch_block
    assert B % Bb == 0, (B, Bb)
    grid = (B // Bb,)

    batched3 = lambda shp: pl.BlockSpec(shp, lambda i: (i, 0, 0))
    batched2 = lambda shp: pl.BlockSpec(shp, lambda i: (i, 0))
    resident = lambda shp: pl.BlockSpec(shp, lambda i: (0, 0))   # VMEM-resident

    in_specs = [
        batched3((Bb, T, I)),            # batch_H
        batched2((Bb, H)),               # prev_h
        batched2((Bb, H)),               # prev_c
        batched2((Bb, E)),               # char_onehots
        resident((I, H)),                # w_i2h
        resident((H, H)),                # w_h2h
        resident((1, H)),                # b_h2h
        resident((1, H)),                # w_score (row)
        resident((I, 4 * H)),            # W_ih context block
        resident((E, 4 * H)),            # W_ih one-hot block
        resident((H, 4 * H)),            # W_hh
        resident((1, 4 * H)),            # b_ih + b_hh
    ]
    out_specs = [
        batched2((Bb, H)),               # h_new
        batched2((Bb, H)),               # c_new
        batched2((Bb, T)),               # alpha (lane-dense)
    ]
    out_shape = (
        jax.ShapeDtypeStruct((B, H), jnp.float32),
        jax.ShapeDtypeStruct((B, H), jnp.float32),
        jax.ShapeDtypeStruct((B, T), jnp.float32),
    )

    args = (batch_H_mm, prev_h, prev_c, char_onehots,
            w_i2h, w_h2h, params["b_h2h"], w_score_row,
            w_c, w_e, w_hg, b_gates)

    # Advisory cost estimate for XLA's scheduler.
    flops = (2 * B * T * I * H            # i2h
             + 2 * B * H * H              # h2h
             + 2 * B * T * H              # score
             + 2 * B * T * I              # context
             + 2 * B * (I + E + H) * 4 * H)  # gates
    transcendentals = B * T * H + B * T + 5 * B * H
    in_bytes = sum(int(a.size) * a.dtype.itemsize for a in args)
    out_bytes = 4 * (2 * B * H + B * T)
    cost = pl.CostEstimate(flops=int(flops),
                           transcendentals=int(transcendentals),
                           bytes_accessed=int(in_bytes + out_bytes))

    fn = pl.pallas_call(
        functools.partial(attention_cell_kernel, ew_dtype=ew_dtype),
        out_shape=out_shape,
        grid_spec=pltpu.PrefetchScalarGridSpec(
            num_scalar_prefetch=0, grid=grid,
            in_specs=in_specs, out_specs=out_specs),
        compiler_params=pltpu.CompilerParams(
            dimension_semantics=("parallel",),
            vmem_limit_bytes=32 * 1024 * 1024),
        cost_estimate=cost,
    )
    h_new, c_new, alpha = fn(*args)
    return h_new, c_new, alpha[:, :, None]            # alpha -> (B, T, 1)


def attention_cell_reference(batch_H, prev_h, prev_c, char_onehots, params):
    """Pure-JAX f32 reference mirroring the PyTorch module."""
    proj = jnp.einsum("bti,ih->bth", batch_H, params["w_i2h"])
    hproj = prev_h @ params["w_h2h"] + params["b_h2h"]
    e = jnp.einsum("bth,ho->bto", jnp.tanh(proj + hproj[:, None, :]), params["w_score"])
    alpha = jax.nn.softmax(e, axis=1)                       # (B, T, 1)
    context = jnp.einsum("bto,bti->bi", alpha, batch_H)     # (B, I)
    concat = jnp.concatenate([context, char_onehots], axis=1)
    gates = concat @ params["w_ih"] + params["b_ih"] + prev_h @ params["w_hh"] + params["b_hh"]
    H = prev_h.shape[1]
    i_g = jax.nn.sigmoid(gates[:, 0 * H:1 * H])
    f_g = jax.nn.sigmoid(gates[:, 1 * H:2 * H])
    g_g = jnp.tanh(gates[:, 2 * H:3 * H])
    o_g = jax.nn.sigmoid(gates[:, 3 * H:4 * H])
    c_new = f_g * prev_c + i_g * g_g
    h_new = o_g * jnp.tanh(c_new)
    return h_new, c_new, alpha


if __name__ == "__main__":
    T = 8                # num encoder steps
    I = 32               # input_size (encoder feature dim)
    H = 32               # hidden_size
    E = 16               # num_embeddings (onehot width)

    key = jax.random.PRNGKey(0)
    ks = jax.random.split(key, 16)
    scale = 0.1

    # Deterministic synthetic parameters (pre-transposed to [in, out]).
    params = {
        "w_i2h":   scale * jax.random.normal(ks[0], (I, H), jnp.float32),
        "w_h2h":   scale * jax.random.normal(ks[1], (H, H), jnp.float32),
        "b_h2h":   scale * jax.random.normal(ks[2], (1, H), jnp.float32),
        "w_score": scale * jax.random.normal(ks[3], (H, 1), jnp.float32),
        "w_ih":    scale * jax.random.normal(ks[4], (I + E, 4 * H), jnp.float32),
        "w_hh":    scale * jax.random.normal(ks[5], (H, 4 * H), jnp.float32),
        "b_ih":    scale * jax.random.normal(ks[6], (1, 4 * H), jnp.float32),
        "b_hh":    scale * jax.random.normal(ks[7], (1, 4 * H), jnp.float32),
    }

    # --- test 1: small batch, f32 path (strict check) ------------------------
    B = 2
    batch_H = jax.random.normal(ks[8], (B, T, I), jnp.float32)
    prev_h = jax.random.normal(ks[9], (B, H), jnp.float32)
    prev_c = jax.random.normal(ks[10], (B, H), jnp.float32)
    char_onehots = jax.nn.one_hot(
        jax.random.randint(ks[11], (B,), 0, E), E, dtype=jnp.float32)

    h_ref, c_ref, a_ref = attention_cell_reference(batch_H, prev_h, prev_c,
                                                   char_onehots, params)
    h_new, c_new, alpha = attention_cell(batch_H, prev_h, prev_c,
                                         char_onehots, params)
    jax.block_until_ready((h_new, c_new, alpha))
    assert jnp.allclose(h_new, h_ref, atol=1e-5, rtol=1e-5)
    assert jnp.allclose(c_new, c_ref, atol=1e-5, rtol=1e-5)
    assert jnp.allclose(alpha, a_ref, atol=1e-5, rtol=1e-5)

    # --- test 2: bf16 MXU-operand path (f32 accumulate + f32 elementwise) ----
    h_bf, c_bf, a_bf = attention_cell(batch_H, prev_h, prev_c, char_onehots,
                                      params, matmul_dtype=jnp.bfloat16)
    jax.block_until_ready((h_bf, c_bf, a_bf))
    assert jnp.allclose(h_bf, h_ref, atol=5e-2, rtol=5e-2)
    assert jnp.allclose(c_bf, c_ref, atol=5e-2, rtol=5e-2)
    assert jnp.allclose(a_bf, a_ref, atol=5e-2, rtol=5e-2)

    # --- test 3: larger batch exercising the multi-step pipelined grid -------
    B2 = 16
    batch_H2 = jax.random.normal(ks[12], (B2, T, I), jnp.float32)
    prev_h2 = jax.random.normal(ks[13], (B2, H), jnp.float32)
    prev_c2 = jax.random.normal(ks[14], (B2, H), jnp.float32)
    char_onehots2 = jax.nn.one_hot(
        jax.random.randint(ks[15], (B2,), 0, E), E, dtype=jnp.float32)

    h_ref2, c_ref2, a_ref2 = attention_cell_reference(batch_H2, prev_h2, prev_c2,
                                                      char_onehots2, params)
    h2, c2, a2 = attention_cell(batch_H2, prev_h2, prev_c2, char_onehots2,
                                params, batch_block=8)   # grid=(2,)
    jax.block_until_ready((h2, c2, a2))
    assert jnp.allclose(h2, h_ref2, atol=1e-5, rtol=1e-5)
    assert jnp.allclose(c2, c_ref2, atol=1e-5, rtol=1e-5)
    assert jnp.allclose(a2, a_ref2, atol=1e-5, rtol=1e-5)

    print("KERNEL_OK")
</pallas_src>

<mosaic_0001>
module attributes {stable_mosaic.version = 11 : i64} {
  func.func @attention_cell_kernel(%arg0: i32, %arg1: memref<2x8x32xf32, #tpu.memory_space<vmem>>, %arg2: memref<2x32xf32, #tpu.memory_space<vmem>>, %arg3: memref<2x32xf32, #tpu.memory_space<vmem>>, %arg4: memref<2x16xf32, #tpu.memory_space<vmem>>, %arg5: memref<32x32xf32, #tpu.memory_space<vmem>>, %arg6: memref<32x32xf32, #tpu.memory_space<vmem>>, %arg7: memref<1x32xf32, #tpu.memory_space<vmem>>, %arg8: memref<1x32xf32, #tpu.memory_space<vmem>>, %arg9: memref<32x128xf32, #tpu.memory_space<vmem>>, %arg10: memref<16x128xf32, #tpu.memory_space<vmem>>, %arg11: memref<32x128xf32, #tpu.memory_space<vmem>>, %arg12: memref<1x128xf32, #tpu.memory_space<vmem>>, %arg13: memref<2x32xf32, #tpu.memory_space<vmem>>, %arg14: memref<2x32xf32, #tpu.memory_space<vmem>>, %arg15: memref<2x8xf32, #tpu.memory_space<vmem>>) attributes {dimension_semantics = [#tpu.dimension_semantics<parallel>], iteration_bounds = array<i64: 1>, scalar_prefetch = 0 : i64, scratch_operands = 0 : i64, tpu.core_type = #tpu.core_type<tc>, window_params = [{transform_indices = @transform_0, window_bounds = array<i64: 2, 8, 32>}, {transform_indices = @transform_1, window_bounds = array<i64: 2, 32>}, {transform_indices = @transform_2, window_bounds = array<i64: 2, 32>}, {transform_indices = @transform_3, window_bounds = array<i64: 2, 16>}, {pipeline_mode = #tpu.pipeline_mode<synchronous>, transform_indices = @transform_4, window_bounds = array<i64: 32, 32>}, {pipeline_mode = #tpu.pipeline_mode<synchronous>, transform_indices = @transform_5, window_bounds = array<i64: 32, 32>}, {pipeline_mode = #tpu.pipeline_mode<synchronous>, transform_indices = @transform_6, window_bounds = array<i64: 1, 32>}, {pipeline_mode = #tpu.pipeline_mode<synchronous>, transform_indices = @transform_7, window_bounds = array<i64: 1, 32>}, {pipeline_mode = #tpu.pipeline_mode<synchronous>, transform_indices = @transform_8, window_bounds = array<i64: 32, 128>}, {pipeline_mode = #tpu.pipeline_mode<synchronous>, transform_indices = @transform_9, window_bounds = array<i64: 16, 128>}, {pipeline_mode = #tpu.pipeline_mode<synchronous>, transform_indices = @transform_10, window_bounds = array<i64: 32, 128>}, {pipeline_mode = #tpu.pipeline_mode<synchronous>, transform_indices = @transform_11, window_bounds = array<i64: 1, 128>}, {transform_indices = @transform_12, window_bounds = array<i64: 2, 32>}, {transform_indices = @transform_13, window_bounds = array<i64: 2, 32>}, {transform_indices = @transform_14, window_bounds = array<i64: 2, 8>}]} {
    %c0 = arith.constant 0 : index
    %c0_0 = arith.constant 0 : index
    %c0_1 = arith.constant 0 : index
    %0 = vector.load %arg1[%c0, %c0_0, %c0_1] : memref<2x8x32xf32, #tpu.memory_space<vmem>>, vector<2x8x32xf32>
    %c0_2 = arith.constant 0 : index
    %c0_3 = arith.constant 0 : index
    %1 = vector.load %arg2[%c0_2, %c0_3] : memref<2x32xf32, #tpu.memory_space<vmem>>, vector<2x32xf32>
    %c0_4 = arith.constant 0 : index
    %c0_5 = arith.constant 0 : index
    %2 = vector.load %arg3[%c0_4, %c0_5] : memref<2x32xf32, #tpu.memory_space<vmem>>, vector<2x32xf32>
    %c0_6 = arith.constant 0 : index
    %c0_7 = arith.constant 0 : index
    %3 = vector.load %arg4[%c0_6, %c0_7] : memref<2x16xf32, #tpu.memory_space<vmem>>, vector<2x16xf32>
    %4 = vector.shape_cast %0 : vector<2x8x32xf32> to vector<16x32xf32>
    %c0_8 = arith.constant 0 : index
    %c0_9 = arith.constant 0 : index
    %5 = vector.load %arg5[%c0_8, %c0_9] : memref<32x32xf32, #tpu.memory_space<vmem>>, vector<32x32xf32>
    %cst = arith.constant dense<0.000000e+00> : vector<16x32xf32>
    %6 = tpu.matmul %4, %5, %cst {dimension_numbers = #tpu.dot_dimension_numbers<[1], [0], [0], [1], [0, 0, 1, 1], [], []>} : vector<16x32xf32>, vector<32x32xf32>, vector<16x32xf32> -> vector<16x32xf32>
    %7 = vector.shape_cast %6 : vector<16x32xf32> to vector<2x8x32xf32>
    %c0_10 = arith.constant 0 : index
    %c0_11 = arith.constant 0 : index
    %8 = vector.load %arg6[%c0_10, %c0_11] : memref<32x32xf32, #tpu.memory_space<vmem>>, vector<32x32xf32>
    %cst_12 = arith.constant dense<0.000000e+00> : vector<2x32xf32>
    %9 = tpu.matmul %1, %8, %cst_12 {dimension_numbers = #tpu.dot_dimension_numbers<[1], [0], [0], [1], [0, 0, 1, 1], [], []>} : vector<2x32xf32>, vector<32x32xf32>, vector<2x32xf32> -> vector<2x32xf32>
    %c0_13 = arith.constant 0 : index
    %c0_14 = arith.constant 0 : index
    %10 = vector.load %arg7[%c0_13, %c0_14] : memref<1x32xf32, #tpu.memory_space<vmem>>, vector<1x32xf32>
    %11 = vector.broadcast %10 : vector<1x32xf32> to vector<2x32xf32>
    %12 = arith.addf %9, %11 : vector<2x32xf32>
    %13 = vector.shape_cast %12 : vector<2x32xf32> to vector<2x1x32xf32>
    %14 = vector.broadcast %13 : vector<2x1x32xf32> to vector<2x8x32xf32>
    %15 = arith.addf %7, %14 : vector<2x8x32xf32>
    %16 = math.tanh %15 : vector<2x8x32xf32>
    %c0_15 = arith.constant 0 : index
    %c0_16 = arith.constant 0 : index
    %17 = vector.load %arg8[%c0_15, %c0_16] : memref<1x32xf32, #tpu.memory_space<vmem>>, vector<1x32xf32>
    %18 = vector.shape_cast %17 : vector<1x32xf32> to vector<1x1x32xf32>
    %19 = vector.broadcast %18 : vector<1x1x32xf32> to vector<2x8x32xf32>
    %20 = arith.mulf %16, %19 : vector<2x8x32xf32>
    %cst_17 = arith.constant dense<0.000000e+00> : vector<2x8xf32>
    %21 = vector.multi_reduction <add>, %20, %cst_17 [2] : vector<2x8x32xf32> to vector<2x8xf32>
    %cst_18 = arith.constant dense<0xFF800000> : vector<2xf32>
    %22 = vector.multi_reduction <maximumf>, %21, %cst_18 [1] : vector<2x8xf32> to vector<2xf32>
    %23 = vector.shape_cast %22 : vector<2xf32> to vector<2x1xf32>
    %24 = vector.broadcast %23 : vector<2x1xf32> to vector<2x8xf32>
    %25 = arith.subf %21, %24 : vector<2x8xf32>
    %26 = math.exp %25 : vector<2x8xf32>
    %cst_19 = arith.constant dense<0.000000e+00> : vector<2xf32>
    %27 = vector.multi_reduction <add>, %26, %cst_19 [1] : vector<2x8xf32> to vector<2xf32>
    %28 = vector.shape_cast %27 : vector<2xf32> to vector<2x1xf32>
    %29 = vector.broadcast %28 : vector<2x1xf32> to vector<2x8xf32>
    %30 = arith.divf %26, %29 : vector<2x8xf32>
    %31 = vector.shape_cast %30 : vector<2x8xf32> to vector<2x8x1xf32>
    %32 = vector.broadcast %31 : vector<2x8x1xf32> to vector<2x8x32xf32>
    %33 = arith.mulf %32, %0 : vector<2x8x32xf32>
    %cst_20 = arith.constant dense<0.000000e+00> : vector<2x32xf32>
    %34 = vector.multi_reduction <add>, %33, %cst_20 [1] : vector<2x8x32xf32> to vector<2x32xf32>
    %c0_21 = arith.constant 0 : index
    %c0_22 = arith.constant 0 : index
    %35 = vector.load %arg9[%c0_21, %c0_22] : memref<32x128xf32, #tpu.memory_space<vmem>>, vector<32x128xf32>
    %cst_23 = arith.constant dense<0.000000e+00> : vector<2x128xf32>
    %36 = tpu.matmul %34, %35, %cst_23 {dimension_numbers = #tpu.dot_dimension_numbers<[1], [0], [0], [1], [0, 0, 1, 1], [], []>} : vector<2x32xf32>, vector<32x128xf32>, vector<2x128xf32> -> vector<2x128xf32>
    %c0_24 = arith.constant 0 : index
    %c0_25 = arith.constant 0 : index
    %37 = vector.load %arg10[%c0_24, %c0_25] : memref<16x128xf32, #tpu.memory_space<vmem>>, vector<16x128xf32>
    %cst_26 = arith.constant dense<0.000000e+00> : vector<2x128xf32>
    %38 = tpu.matmul %3, %37, %cst_26 {dimension_numbers = #tpu.dot_dimension_numbers<[1], [0], [0], [1], [0, 0, 1, 1], [], []>} : vector<2x16xf32>, vector<16x128xf32>, vector<2x128xf32> -> vector<2x128xf32>
    %39 = arith.addf %36, %38 : vector<2x128xf32>
    %c0_27 = arith.constant 0 : index
    %c0_28 = arith.constant 0 : index
    %40 = vector.load %arg11[%c0_27, %c0_28] : memref<32x128xf32, #tpu.memory_space<vmem>>, vector<32x128xf32>
    %cst_29 = arith.constant dense<0.000000e+00> : vector<2x128xf32>
    %41 = tpu.matmul %1, %40, %cst_29 {dimension_numbers = #tpu.dot_dimension_numbers<[1], [0], [0], [1], [0, 0, 1, 1], [], []>} : vector<2x32xf32>, vector<32x128xf32>, vector<2x128xf32> -> vector<2x128xf32>
    %42 = arith.addf %39, %41 : vector<2x128xf32>
    %c0_30 = arith.constant 0 : index
    %c0_31 = arith.constant 0 : index
    %43 = vector.load %arg12[%c0_30, %c0_31] : memref<1x128xf32, #tpu.memory_space<vmem>>, vector<1x128xf32>
    %44 = vector.broadcast %43 : vector<1x128xf32> to vector<2x128xf32>
    %45 = arith.addf %42, %44 : vector<2x128xf32>
    %46 = vector.extract_strided_slice %45 {offsets = [0, 0], sizes = [2, 32], strides = [1, 1]} : vector<2x128xf32> to vector<2x32xf32>
    %47 = arith.negf %46 : vector<2x32xf32>
    %48 = math.exp %47 : vector<2x32xf32>
    %cst_32 = arith.constant 1.000000e+00 : f32
    %49 = vector.broadcast %cst_32 : f32 to vector<2x32xf32>
    %50 = arith.addf %49, %48 : vector<2x32xf32>
    %51 = arith.divf %49, %50 : vector<2x32xf32>
    %52 = vector.extract_strided_slice %45 {offsets = [0, 32], sizes = [2, 32], strides = [1, 1]} : vector<2x128xf32> to vector<2x32xf32>
    %53 = arith.negf %52 : vector<2x32xf32>
    %54 = math.exp %53 : vector<2x32xf32>
    %cst_33 = arith.constant 1.000000e+00 : f32
    %55 = vector.broadcast %cst_33 : f32 to vector<2x32xf32>
    %56 = arith.addf %55, %54 : vector<2x32xf32>
    %57 = arith.divf %55, %56 : vector<2x32xf32>
    %58 = vector.extract_strided_slice %45 {offsets = [0, 64], sizes = [2, 32], strides = [1, 1]} : vector<2x128xf32> to vector<2x32xf32>
    %59 = math.tanh %58 : vector<2x32xf32>
    %60 = vector.extract_strided_slice %45 {offsets = [0, 96], sizes = [2, 32], strides = [1, 1]} : vector<2x128xf32> to vector<2x32xf32>
    %61 = arith.negf %60 : vector<2x32xf32>
    %62 = math.exp %61 : vector<2x32xf32>
    %cst_34 = arith.constant 1.000000e+00 : f32
    %63 = vector.broadcast %cst_34 : f32 to vector<2x32xf32>
    %64 = arith.addf %63, %62 : vector<2x32xf32>
    %65 = arith.divf %63, %64 : vector<2x32xf32>
    %66 = arith.mulf %57, %2 : vector<2x32xf32>
    %67 = arith.mulf %51, %59 : vector<2x32xf32>
    %68 = arith.addf %66, %67 : vector<2x32xf32>
    %69 = math.tanh %68 : vector<2x32xf32>
    %70 = arith.mulf %65, %69 : vector<2x32xf32>
    %c0_35 = arith.constant 0 : index
    %c0_36 = arith.constant 0 : index
    %71 = vector.load %arg13[%c0_35, %c0_36] : memref<2x32xf32, #tpu.memory_space<vmem>>, vector<2x32xf32>
    tpu.vector_store %arg13[%c0_35, %c0_36], %70 {strides = array<i32>} : memref<2x32xf32, #tpu.memory_space<vmem>>, vector<2x32xf32>,
    %c0_37 = arith.constant 0 : index
    %c0_38 = arith.constant 0 : index
    %72 = vector.load %arg14[%c0_37, %c0_38] : memref<2x32xf32, #tpu.memory_space<vmem>>, vector<2x32xf32>
    tpu.vector_store %arg14[%c0_37, %c0_38], %68 {strides = array<i32>} : memref<2x32xf32, #tpu.memory_space<vmem>>, vector<2x32xf32>,
    %c0_39 = arith.constant 0 : index
    %c0_40 = arith.constant 0 : index
    %73 = vector.load %arg15[%c0_39, %c0_40] : memref<2x8xf32, #tpu.memory_space<vmem>>, vector<2x8xf32>
    tpu.vector_store %arg15[%c0_39, %c0_40], %30 {strides = array<i32>} : memref<2x8xf32, #tpu.memory_space<vmem>>, vector<2x8xf32>,
    return
  }
  func.func @transform_0(%arg0: i32) -> (i32, i32, i32) {
    %c0_i32 = arith.constant 0 : i32
    %c0_i32_0 = arith.constant 0 : i32
    %c0_i32_1 = arith.constant 0 : i32
    return %arg0, %c0_i32, %c0_i32_0 : i32, i32, i32
  }
  func.func @transform_1(%arg0: i32) -> (i32, i32) {
    %c0_i32 = arith.constant 0 : i32
    %c0_i32_0 = arith.constant 0 : i32
    return %arg0, %c0_i32 : i32, i32
  }
  func.func @transform_2(%arg0: i32) -> (i32, i32) {
    %c0_i32 = arith.constant 0 : i32
    %c0_i32_0 = arith.constant 0 : i32
    return %arg0, %c0_i32 : i32, i32
  }
  func.func @transform_3(%arg0: i32) -> (i32, i32) {
    %c0_i32 = arith.constant 0 : i32
    %c0_i32_0 = arith.constant 0 : i32
    return %arg0, %c0_i32 : i32, i32
  }
  func.func @transform_4(%arg0: i32) -> (i32, i32) {
    %c0_i32 = arith.constant 0 : i32
    %c0_i32_0 = arith.constant 0 : i32
    %c0_i32_1 = arith.constant 0 : i32
    return %c0_i32, %c0_i32_0 : i32, i32
  }
  func.func @transform_5(%arg0: i32) -> (i32, i32) {
    %c0_i32 = arith.constant 0 : i32
    %c0_i32_0 = arith.constant 0 : i32
    %c0_i32_1 = arith.constant 0 : i32
    return %c0_i32, %c0_i32_0 : i32, i32
  }
  func.func @transform_6(%arg0: i32) -> (i32, i32) {
    %c0_i32 = arith.constant 0 : i32
    %c0_i32_0 = arith.constant 0 : i32
    %c0_i32_1 = arith.constant 0 : i32
    return %c0_i32, %c0_i32_0 : i32, i32
  }
  func.func @transform_7(%arg0: i32) -> (i32, i32) {
    %c0_i32 = arith.constant 0 : i32
    %c0_i32_0 = arith.constant 0 : i32
    %c0_i32_1 = arith.constant 0 : i32
    return %c0_i32, %c0_i32_0 : i32, i32
  }
  func.func @transform_8(%arg0: i32) -> (i32, i32) {
    %c0_i32 = arith.constant 0 : i32
    %c0_i32_0 = arith.constant 0 : i32
    %c0_i32_1 = arith.constant 0 : i32
    return %c0_i32, %c0_i32_0 : i32, i32
  }
  func.func @transform_9(%arg0: i32) -> (i32, i32) {
    %c0_i32 = arith.constant 0 : i32
    %c0_i32_0 = arith.constant 0 : i32
    %c0_i32_1 = arith.constant 0 : i32
    return %c0_i32, %c0_i32_0 : i32, i32
  }
  func.func @transform_10(%arg0: i32) -> (i32, i32) {
    %c0_i32 = arith.constant 0 : i32
    %c0_i32_0 = arith.constant 0 : i32
    %c0_i32_1 = arith.constant 0 : i32
    return %c0_i32, %c0_i32_0 : i32, i32
  }
  func.func @transform_11(%arg0: i32) -> (i32, i32) {
    %c0_i32 = arith.constant 0 : i32
    %c0_i32_0 = arith.constant 0 : i32
    %c0_i32_1 = arith.constant 0 : i32
    return %c0_i32, %c0_i32_0 : i32, i32
  }
  func.func @transform_12(%arg0: i32) -> (i32, i32) {
    %c0_i32 = arith.constant 0 : i32
    %c0_i32_0 = arith.constant 0 : i32
    return %arg0, %c0_i32 : i32, i32
  }
  func.func @transform_13(%arg0: i32) -> (i32, i32) {
    %c0_i32 = arith.constant 0 : i32
    %c0_i32_0 = arith.constant 0 : i32
    return %arg0, %c0_i32 : i32, i32
  }
  func.func @transform_14(%arg0: i32) -> (i32, i32) {
    %c0_i32 = arith.constant 0 : i32
    %c0_i32_0 = arith.constant 0 : i32
    return %arg0, %c0_i32 : i32, i32
  }
}

</mosaic_0001>

<llo_original>
// kernel: tpu_custom_call.1
$region0: #{tpu_custom_call.1}
  #allocation0 [shape = 'u32[]', space=smem, size = 0x4, offset = 0x4, fixed_abs, tag = 'smem constant byte address 0x4 - core index']
  #allocation1 [shape = 'u32[144,128]{1,0:T(1,128)}', space=vmem, size = 0x12000, scoped, tag = 'internal scratch']
  %s0 = inlined_call_operand.hbm [shape: f32[2,8,32], index: 0, kind: input, shape index: {}]
  %s1 = inlined_call_operand.vmem [shape: f32[2,32], index: 1, kind: input, shape index: {}]
  %s2 = inlined_call_operand.vmem [shape: f32[2,32], index: 2, kind: input, shape index: {}]
  %s3 = inlined_call_operand.hbm [shape: f32[2,16], index: 3, kind: input, shape index: {}]
  %s4 = inlined_call_operand.hbm [shape: f32[32,32], index: 4, kind: input, shape index: {}]
  %s5 = inlined_call_operand.hbm [shape: f32[32,32], index: 5, kind: input, shape index: {}]
  %s6 = inlined_call_operand.vmem [shape: f32[1,32], index: 6, kind: input, shape index: {}]
  %s7 = inlined_call_operand.hbm [shape: f32[1,32], index: 7, kind: input, shape index: {}]
  %s8 = inlined_call_operand.hbm [shape: f32[32,128], index: 8, kind: input, shape index: {}]
  %s9 = inlined_call_operand.hbm [shape: f32[16,128], index: 9, kind: input, shape index: {}]
  %s10 = inlined_call_operand.vmem [shape: f32[32,128], index: 10, kind: input, shape index: {}]
  %s11 = inlined_call_operand.vmem [shape: f32[1,128], index: 11, kind: input, shape index: {}]
  %s12 = inlined_call_operand.hbm [shape: f32[2,32], index: 12, kind: output, shape index: {0}]
  %s13 = inlined_call_operand.hbm [shape: f32[2,32], index: 13, kind: output, shape index: {1}]
  %s14 = inlined_call_operand.hbm [shape: f32[2,8], index: 14, kind: output, shape index: {2}]
  %15 = xla_tuple %s12, %s13, %s14
  %s16 = sld [smem:[#allocation0]]
  $region102: #{tpu_custom_call.1} parent=0
    _
  %s18 = ssub.s32 1, %s16
  %s19 = scalar_select 0, %s18, %s16
  $region1: #{tpu_custom_call.1} parent=0
    #allocation2 [shape = 'u8[8192]{0}', space=vmem, size = 0x2000, scoped, tag = 'input window, operand 0, single buffered']
    #allocation3 [shape = 's32[1]{0}', space=sflag, size = 0x4, scoped, tag = 'scoped memory for tpu_custom_call.1']
    #allocation4 [shape = 's32[1]{0}', space=sflag, size = 0x4, scoped, tag = 'scoped memory for tpu_custom_call.1']
    #allocation5 [shape = 'u8[1024]{0}', space=vmem, size = 0x400, scoped, tag = 'input window, operand 3, single buffered']
    #allocation6 [shape = 's32[1]{0}', space=sflag, size = 0x4, scoped, tag = 'scoped memory for tpu_custom_call.1']
    #allocation7 [shape = 'u8[16384]{0}', space=vmem, size = 0x4000, scoped, tag = 'input window, operand 4, single buffered']
    #allocation8 [shape = 'u8[16384]{0}', space=vmem, size = 0x4000, scoped, tag = 'input window, operand 5, single buffered']
    #allocation9 [shape = 's32[1]{0}', space=sflag, size = 0x4, scoped, tag = 'scoped memory for tpu_custom_call.1']
    #allocation10 [shape = 'u8[512]{0}', space=vmem, size = 0x400, scoped, tag = 'input window, operand 7, single buffered']
    #allocation11 [shape = 'u8[16384]{0}', space=vmem, size = 0x4000, scoped, tag = 'input window, operand 8, single buffered']
    #allocation12 [shape = 's32[1]{0}', space=sflag, size = 0x4, scoped, tag = 'scoped memory for tpu_custom_call.1']
    #allocation13 [shape = 'u8[8192]{0}', space=vmem, size = 0x2000, scoped, tag = 'input window, operand 9, single buffered']
    #allocation14 [shape = 'u8[1024]{0}', space=vmem, size = 0x400, scoped, tag = 'output window, operand 0, single buffered']
    #allocation15 [shape = 'u8[1024]{0}', space=vmem, size = 0x400, scoped, tag = 'output window, operand 1, single buffered']
    #allocation16 [shape = 's32[1]{0}', space=sflag, size = 0x4, scoped, tag = 'scoped memory for tpu_custom_call.1']
    #allocation17 [shape = 'u8[1024]{0}', space=vmem, size = 0x400, scoped, tag = 'output window, operand 2, single buffered']
    %20 = vsyncpa [#allocation3], 0
    %21 = vsyncpa [#allocation6], 0
    %22 = vsyncpa [#allocation9], 0
    %23 = vsyncpa [#allocation12], 0
    %24 = vsyncpa [#allocation4], 0
    %25 = vsyncpa [#allocation16], 0
    // Predicated region
    $region2: #{tpu_custom_call.1} parent=1 // pred_check
      _
    $region3: #{tpu_custom_call.1} parent=1 // pred_check_branch
      %27 = sbr.rel (0) target = $region5
    $region4: #{tpu_custom_call.1} parent=1 // pred_region
      %s29 = ssub.s32 256, 256
      %30 = vsyncadd [#allocation3], %s29
      %s31 = sshll.u32 [#allocation2], 4
      %s32 = int_to_ptr.vmem [resolvable:$true] %s31
      %37 = dma.hbm_to_vmem [thread:$0]  %s0, 256, %s32, [#allocation3], 128, 128, 8
    $region5: #{tpu_custom_call.1} parent=1 // pred_fallthru
      _
    // Predicated region
    $region6: #{tpu_custom_call.1} parent=1 // pred_check
      _
    $region7: #{tpu_custom_call.1} parent=1 // pred_check_branch
      %39 = sbr.rel (0) target = $region9
    $region8: #{tpu_custom_call.1} parent=1 // pred_region
      _
    $region9: #{tpu_custom_call.1} parent=1 // pred_fallthru
      _
    // Predicated region
    $region10: #{tpu_custom_call.1} parent=1 // pred_check
      _
    $region11: #{tpu_custom_call.1} parent=1 // pred_check_branch
      %41 = sbr.rel (0) target = $region13
    $region12: #{tpu_custom_call.1} parent=1 // pred_region
      _
    $region13: #{tpu_custom_call.1} parent=1 // pred_fallthru
      _
    // Predicated region
    $region14: #{tpu_custom_call.1} parent=1 // pred_check
      _
    $region15: #{tpu_custom_call.1} parent=1 // pred_check_branch
      %43 = sbr.rel (0) target = $region17
    $region16: #{tpu_custom_call.1} parent=1 // pred_region
      %s45 = ssub.s32 32, 32
      %46 = vsyncadd [#allocation6], %s45
      %s48 = sshll.u32 [#allocation5], 4
      %s49 = int_to_ptr.vmem [resolvable:$true] %s48
      %51 = dma.hbm_to_vmem [thread:$0]  %s3, 32, %s49, [#allocation6]
    $region17: #{tpu_custom_call.1} parent=1 // pred_fallthru
      _
    // Predicated region
    $region18: #{tpu_custom_call.1} parent=1 // pred_check
      _
    $region19: #{tpu_custom_call.1} parent=1 // pred_check_branch
      %53 = sbr.rel (0) target = $region21
    $region20: #{tpu_custom_call.1} parent=1 // pred_region
      %s55 = ssub.s32 512, 512
      %56 = vsyncadd [#allocation6], %s55
      %s57 = sshll.u32 [#allocation7], 4
      %s58 = int_to_ptr.vmem [resolvable:$true] %s57
      %63 = dma.hbm_to_vmem [thread:$0]  %s4, 512, %s58, [#allocation6], 128, 128, 8
    $region21: #{tpu_custom_call.1} parent=1 // pred_fallthru
      _
    // Predicated region
    $region22: #{tpu_custom_call.1} parent=1 // pred_check
      _
    $region23: #{tpu_custom_call.1} parent=1 // pred_check_branch
      %65 = sbr.rel (0) target = $region25
    $region24: #{tpu_custom_call.1} parent=1 // pred_region
      %s67 = ssub.s32 512, 512
      %68 = vsyncadd [#allocation9], %s67
      %s69 = sshll.u32 [#allocation8], 4
      %s70 = int_to_ptr.vmem [resolvable:$true] %s69
      %75 = dma.hbm_to_vmem [thread:$0]  %s5, 512, %s70, [#allocation9], 128, 128, 8
    $region25: #{tpu_custom_call.1} parent=1 // pred_fallthru
      _
    // Predicated region
    $region26: #{tpu_custom_call.1} parent=1 // pred_check
      _
    $region27: #{tpu_custom_call.1} parent=1 // pred_check_branch
      %77 = sbr.rel (0) target = $region29
    $region28: #{tpu_custom_call.1} parent=1 // pred_region
      _
    $region29: #{tpu_custom_call.1} parent=1 // pred_fallthru
      _
    // Predicated region
    $region30: #{tpu_custom_call.1} parent=1 // pred_check
      _
    $region31: #{tpu_custom_call.1} parent=1 // pred_check_branch
      %79 = sbr.rel (0) target = $region33
    $region32: #{tpu_custom_call.1} parent=1 // pred_region
      %s81 = ssub.s32 16, 16
      %82 = vsyncadd [#allocation9], %s81
      %s84 = sshll.u32 [#allocation10], 4
      %s85 = int_to_ptr.vmem [resolvable:$true] %s84
      %87 = dma.hbm_to_vmem [thread:$0]  %s7, 16, %s85, [#allocation9]
    $region33: #{tpu_custom_call.1} parent=1 // pred_fallthru
      _
    // Predicated region
    $region34: #{tpu_custom_call.1} parent=1 // pred_check
      _
    $region35: #{tpu_custom_call.1} parent=1 // pred_check_branch
      %89 = sbr.rel (0) target = $region37
    $region36: #{tpu_custom_call.1} parent=1 // pred_region
      %s91 = ssub.s32 512, 512
      %92 = vsyncadd [#allocation12], %s91
      %s93 = sshll.u32 [#allocation11], 4
      %s94 = int_to_ptr.vmem [resolvable:$true] %s93
      %99 = dma.hbm_to_vmem [thread:$0]  %s8, 512, %s94, [#allocation12], 128, 128, 8
    $region37: #{tpu_custom_call.1} parent=1 // pred_fallthru
      _
    // Predicated region
    $region38: #{tpu_custom_call.1} parent=1 // pred_check
      _
    $region39: #{tpu_custom_call.1} parent=1 // pred_check_branch
      %101 = sbr.rel (0) target = $region41
    $region40: #{tpu_custom_call.1} parent=1 // pred_region
      %s103 = ssub.s32 256, 256
      %104 = vsyncadd [#allocation12], %s103
      %s105 = sshll.u32 [#allocation13], 4
      %s106 = int_to_ptr.vmem [resolvable:$true] %s105
      %111 = dma.hbm_to_vmem [thread:$0]  %s9, 256, %s106, [#allocation12], 128, 128, 8
    $region41: #{tpu_custom_call.1} parent=1 // pred_fallthru
      _
    // Predicated region
    $region42: #{tpu_custom_call.1} parent=1 // pred_check
      _
    $region43: #{tpu_custom_call.1} parent=1 // pred_check_branch
      %113 = sbr.rel (0) target = $region45
    $region44: #{tpu_custom_call.1} parent=1 // pred_region
      _
    $region45: #{tpu_custom_call.1} parent=1 // pred_fallthru
      _
    // Predicated region
    $region46: #{tpu_custom_call.1} parent=1 // pred_check
      _
    $region47: #{tpu_custom_call.1} parent=1 // pred_check_branch
      %115 = sbr.rel (0) target = $region49
    $region48: #{tpu_custom_call.1} parent=1 // pred_region
      _
    $region49: #{tpu_custom_call.1} parent=1 // pred_fallthru
      _
    // Predicated region
    $region50: #{tpu_custom_call.1} parent=1 // pred_check
      _
    $region51: #{tpu_custom_call.1} parent=1 // pred_check_branch
      %117 = sbr.rel (0) target = $region53
    $region52: #{tpu_custom_call.1} parent=1 // pred_region
      %118 = dma.done [#allocation3], 256
    $region53: #{tpu_custom_call.1} parent=1 // pred_fallthru
      _
    // Predicated region
    $region54: #{tpu_custom_call.1} parent=1 // pred_check
      _
    $region55: #{tpu_custom_call.1} parent=1 // pred_check_branch
      %120 = sbr.rel (0) target = $region57
    $region56: #{tpu_custom_call.1} parent=1 // pred_region
      %121 = dma.done [#allocation6], 32
    $region57: #{tpu_custom_call.1} parent=1 // pred_fallthru
      _
    // Predicated region
    $region58: #{tpu_custom_call.1} parent=1 // pred_check
      _
    $region59: #{tpu_custom_call.1} parent=1 // pred_check_branch
      %123 = sbr.rel (0) target = $region61
    $region60: #{tpu_custom_call.1} parent=1 // pred_region
      %124 = dma.done [#allocation6], 512
    $region61: #{tpu_custom_call.1} parent=1 // pred_fallthru
      _
    // Predicated region
    $region62: #{tpu_custom_call.1} parent=1 // pred_check
      _
    $region63: #{tpu_custom_call.1} parent=1 // pred_check_branch
      %126 = sbr.rel (0) target = $region65
    $region64: #{tpu_custom_call.1} parent=1 // pred_region
      %127 = dma.done [#allocation9], 512
    $region65: #{tpu_custom_call.1} parent=1 // pred_fallthru
      _
    // Predicated region
    $region66: #{tpu_custom_call.1} parent=1 // pred_check
      _
    $region67: #{tpu_custom_call.1} parent=1 // pred_check_branch
      %129 = sbr.rel (0) target = $region69
    $region68: #{tpu_custom_call.1} parent=1 // pred_region
      %130 = dma.done [#allocation9], 16
    $region69: #{tpu_custom_call.1} parent=1 // pred_fallthru
      _
    // Predicated region
    $region70: #{tpu_custom_call.1} parent=1 // pred_check
      _
    $region71: #{tpu_custom_call.1} parent=1 // pred_check_branch
      %132 = sbr.rel (0) target = $region73
    $region72: #{tpu_custom_call.1} parent=1 // pred_region
      %133 = dma.done [#allocation12], 512
    $region73: #{tpu_custom_call.1} parent=1 // pred_fallthru
      _
    // Predicated region
    $region74: #{tpu_custom_call.1} parent=1 // pred_check
      _
    $region75: #{tpu_custom_call.1} parent=1 // pred_check_branch
      %135 = sbr.rel (0) target = $region77
    $region76: #{tpu_custom_call.1} parent=1 // pred_region
      %136 = dma.done [#allocation12], 256
    $region77: #{tpu_custom_call.1} parent=1 // pred_fallthru
      _
    %v137 = vld [vmem:[#allocation2] sm:$0xff]
    %v138 = vld [vmem:[#allocation2 + $0x8] sm:$0xff]
    %v139 = vld [vmem:[%s1] sm:$0x3]
    %v140 = vld [vmem:[%s2] sm:$0x3]
    %v141 = vld [vmem:[#allocation5] sm:$0x3]
    %v142 = vld [vmem:[#allocation7] sm:$0xff]
    %v143 = vld [vmem:[#allocation7 + $0x8] sm:$0xff]
    %v144 = vld [vmem:[#allocation7 + $0x10] sm:$0xff]
    %v145 = vld [vmem:[#allocation7 + $0x18] sm:$0xff]
    %vm146 = vcmask 261120
    %v148 = vsel %vm146, %v137, 0
    %v151 = vsel %vm146, %v138, 0
    %153 = vmatprep.subr.mxu0 0.0
    %154 = vmatpush1.msra.mxu0 %v142
    %155 = vmatprep.subr.mxu0 0.0
    %156 = vmatpush1.msra.mxu0 %v143
    %157 = vmatprep.subr.mxu0 0.0
    %158 = vmatpush1.msra.mxu0 %v144
    %159 = vmatprep.subr.mxu0 0.0
    %160 = vmatpush1.msra.mxu0 %v145
    %161 = vmatprep.subr.mxu0 0.0
    %162 = vmatpush1.msra.mxu0 0.0
    %163 = vmatprep.subr.mxu0 0.0
    %164 = vmatpush1.msra.mxu0 0.0
    %165 = vmatprep.subr.mxu0 0.0
    %166 = vmatpush1.msra.mxu0 0.0
    %167 = vmatprep.subr.mxu0 0.0
    %168 = vmatpush1.msra.mxu0 0.0
    %169 = vmatprep.subr.mxu0 0.0
    %170 = vmatpush1.msra.mxu0 0.0
    %171 = vmatprep.subr.mxu0 0.0
    %172 = vmatpush1.msra.mxu0 0.0
    %173 = vmatprep.subr.mxu0 0.0
    %174 = vmatpush1.msra.mxu0 0.0
    %175 = vmatprep.subr.mxu0 0.0
    %176 = vmatpush1.msra.mxu0 0.0
    %177 = vmatprep.subr.mxu0 0.0
    %178 = vmatpush1.msra.mxu0 0.0
    %179 = vmatprep.subr.mxu0 0.0
    %180 = vmatpush1.msra.mxu0 0.0
    %181 = vmatprep.subr.mxu0 0.0
    %182 = vmatpush1.msra.mxu0 0.0
    %183 = vmatprep.subr.mxu0 0.0
    %184 = vmatpush1.msra.mxu0 0.0
    %185 = vmatprep.subr.mxu0 0.0
    %186 = vmatpush1.msra.mxu0 0.0
    %187 = vmatprep.subr.mxu0 0.0
    %188 = vmatpush1.msra.mxu0 0.0
    %189 = vmatprep.subr.mxu0 0.0
    %190 = vmatpush1.msra.mxu0 0.0
    %191 = vmatprep.subr.mxu0 0.0
    %192 = vmatpush1.msra.mxu0 0.0
    %193 = vmatprep.subr.mxu0 0.0
    %194 = vmatpush1.msra.mxu0 0.0
    %195 = vmatprep.subr.mxu0 0.0
    %196 = vmatpush1.msra.mxu0 0.0
    %197 = vmatprep.subr.mxu0 0.0
    %198 = vmatpush1.msra.mxu0 0.0
    %199 = vmatprep.subr.mxu0 0.0
    %200 = vmatpush1.msra.mxu0 0.0
    %201 = vmatprep.subr.mxu0 0.0
    %202 = vmatpush1.msra.mxu0 0.0
    %203 = vmatprep.subr.mxu0 0.0
    %204 = vmatpush1.msra.mxu0 0.0
    %205 = vmatprep.subr.mxu0 0.0
    %206 = vmatpush1.msra.mxu0 0.0
    %207 = vmatprep.subr.mxu0 0.0
    %208 = vmatpush1.msra.mxu0 0.0
    %209 = vmatprep.subr.mxu0 0.0
    %210 = vmatpush1.msra.mxu0 0.0
    %211 = vmatprep.subr.mxu0 0.0
    %212 = vmatpush1.msra.mxu0 0.0
    %213 = vmatprep.subr.mxu0 0.0
    %214 = vmatpush1.msra.mxu0 0.0
    %215 = vmatprep.subr.mxu0 0.0
    %216 = vmatpush1.msra.mxu0 0.0
    %217 = vmatprep.mubr.f32.mxu0 0.0
    %218 = vmatmul.mubr.f32.gmra.mrb[0].mxu0 %v148
    %v219 = vpop.f32.mrb[0].mxu0
    %v220 = vadd.f32 0.0, %v219
    %v221 = vpop.f32.mrb[0].mxu0
    %222 = vmatprep.mubr.f32.mxu0 0.0
    %223 = vmatmul.mubr.f32.gmra.mrb[0].mxu0 %v151
    %v224 = vpop.f32.mrb[0].mxu0
    %v225 = vadd.f32 0.0, %v224
    %v226 = vpop.f32.mrb[0].mxu0
    %227 = vdwg.mxu0
    %v228 = vld [vmem:[#allocation8] sm:$0xff]
    %v229 = vld [vmem:[#allocation8 + $0x8] sm:$0xff]
    %v230 = vld [vmem:[#allocation8 + $0x10] sm:$0xff]
    %v231 = vld [vmem:[#allocation8 + $0x18] sm:$0xff]
    %v232 = vld [vmem:[%s6] sm:$0x1]
    %v234 = vlaneseq
    %v235 = vshrl.u32 %v234, 7
    %v236 = vsub.s32 0, %v235
    %v237 = vrot.slane %v232, %v236
    %v240 = vsel %vm146, %v139, 0
    %242 = vmatprep.subr.mxu0 0.0
    %243 = vmatpush1.msra.mxu0 %v228
    %244 = vmatprep.subr.mxu0 0.0
    %245 = vmatpush1.msra.mxu0 %v229
    %246 = vmatprep.subr.mxu0 0.0
    %247 = vmatpush1.msra.mxu0 %v230
    %248 = vmatprep.subr.mxu0 0.0
    %249 = vmatpush1.msra.mxu0 %v231
    %250 = vmatprep.subr.mxu0 0.0
    %251 = vmatpush1.msra.mxu0 0.0
    %252 = vmatprep.subr.mxu0 0.0
    %253 = vmatpush1.msra.mxu0 0.0
    %254 = vmatprep.subr.mxu0 0.0
    %255 = vmatpush1.msra.mxu0 0.0
    %256 = vmatprep.subr.mxu0 0.0
    %257 = vmatpush1.msra.mxu0 0.0
    %258 = vmatprep.subr.mxu0 0.0
    %259 = vmatpush1.msra.mxu0 0.0
    %260 = vmatprep.subr.mxu0 0.0
    %261 = vmatpush1.msra.mxu0 0.0
    %262 = vmatprep.subr.mxu0 0.0
    %263 = vmatpush1.msra.mxu0 0.0
    %264 = vmatprep.subr.mxu0 0.0
    %265 = vmatpush1.msra.mxu0 0.0
    %266 = vmatprep.subr.mxu0 0.0
    %267 = vmatpush1.msra.mxu0 0.0
    %268 = vmatprep.subr.mxu0 0.0
    %269 = vmatpush1.msra.mxu0 0.0
    %270 = vmatprep.subr.mxu0 0.0
    %271 = vmatpush1.msra.mxu0 0.0
    %272 = vmatprep.subr.mxu0 0.0
    %273 = vmatpush1.msra.mxu0 0.0
    %274 = vmatprep.subr.mxu0 0.0
    %275 = vmatpush1.msra.mxu0 0.0
    %276 = vmatprep.subr.mxu0 0.0
    %277 = vmatpush1.msra.mxu0 0.0
    %278 = vmatprep.subr.mxu0 0.0
    %279 = vmatpush1.msra.mxu0 0.0
    %280 = vmatprep.subr.mxu0 0.0
    %281 = vmatpush1.msra.mxu0 0.0
    %282 = vmatprep.subr.mxu0 0.0
    %283 = vmatpush1.msra.mxu0 0.0
    %284 = vmatprep.subr.mxu0 0.0
    %285 = vmatpush1.msra.mxu0 0.0
    %286 = vmatprep.subr.mxu0 0.0
    %287 = vmatpush1.msra.mxu0 0.0
    %288 = vmatprep.subr.mxu0 0.0
    %289 = vmatpush1.msra.mxu0 0.0
    %290 = vmatprep.subr.mxu0 0.0
    %291 = vmatpush1.msra.mxu0 0.0
    %292 = vmatprep.subr.mxu0 0.0
    %293 = vmatpush1.msra.mxu0 0.0
    %294 = vmatprep.subr.mxu0 0.0
    %295 = vmatpush1.msra.mxu0 0.0
    %296 = vmatprep.subr.mxu0 0.0
    %297 = vmatpush1.msra.mxu0 0.0
    %298 = vmatprep.subr.mxu0 0.0
    %299 = vmatpush1.msra.mxu0 0.0
    %300 = vmatprep.subr.mxu0 0.0
    %301 = vmatpush1.msra.mxu0 0.0
    %302 = vmatprep.subr.mxu0 0.0
    %303 = vmatpush1.msra.mxu0 0.0
    %304 = vmatprep.subr.mxu0 0.0
    %305 = vmatpush1.msra.mxu0 0.0
    %306 = vmatprep.mubr.f32.mxu0 0.0
    %307 = vmatmul.mubr.f32.gmra.mrb[0].mxu0 %v240
    %v308 = vpop.f32.mrb[0].mxu0
    %v309 = vadd.f32 %v237, %v308
    %v310 = vpop.f32.mrb[0].mxu0
    %311 = vdwg.mxu0
    %v314 = vunpack.c.l.s4 1966171168
    %v315 = vunpack.c.0.s8 %v314
    %v316 = vlaneseq
    %v317 = vshrl.u32 %v316, 7
    %v318 = vsub.s32 %v315, %v317
    %v319 = vrot.slane %v309, %v318
    %v320 = vcombine.high %v319, %v319
    %v322 = vunpack.c.l.s4 1966171168
    %v323 = vunpack.c.0.s8 %v322
    %v324 = vlaneseq
    %v325 = vshrl.u32 %v324, 7
    %v326 = vsub.s32 %v323, %v325
    %v327 = vrot.slane %v319, %v326
    %v329 = vunpack.c.l.s4 1966171168
    %v330 = vunpack.c.0.s8 %v329
    %v331 = vlaneseq
    %v332 = vshrl.u32 %v331, 7
    %v333 = vsub.s32 %v330, %v332
    %v334 = vrot.slane %v320, %v333
    %v335 = vlaneseq
    %v336 = vshrl.u32 %v335, 7
    %v337 = vsub.s32 0, %v336
    %v338 = vrot.slane %v327, %v337
    %v339 = vlaneseq
    %v340 = vshrl.u32 %v339, 7
    %v341 = vsub.s32 0, %v340
    %v342 = vrot.slane %v334, %v341
    %v345 = vadd.f32 %v220, %v338
    %v346 = vadd.f32 %v225, %v342
    %v347 = vtanh.pop %v345
    %v348 = vtanh.pop %v346
    %v349 = vld [vmem:[#allocation10] sm:$0x1]
    %v351 = vlaneseq
    %v352 = vshrl.u32 %v351, 7
    %v353 = vsub.s32 0, %v352
    %v354 = vrot.slane %v349, %v353
    %v356 = vmul.f32 %v347, %v354
    %v357 = vmul.f32 %v348, %v354
    %v358 = vsel %vm146, %v356, 0.0
    %359 = vadd.xlane.f32.xlu0 %v358
    %v360 = vpop.xlane.xlu0 %359
    %v361 = vsel %vm146, %v357, 0.0
    %362 = vadd.xlane.f32.xlu0 %v361
    %v363 = vpop.xlane.xlu0 %362
    %v366 = vlaneseq
    %v367 = vand.u32 %v366, 127
    %v368 = vlaneseq
    %v369 = vshrl.u32 %v368, 7
    %v370 = vsub.s32 %v367, %v369
    %v371 = vrot.slane %v360, %v370
    %v372 = vlaneseq
    %v373 = vshrl.u32 %v372, 7
    %v374 = vsub.s32 %v367, %v373
    %v375 = vrot.slane %v363, %v374
    %vm376 = vcmask 1041409
    %v377 = vsel %vm376, %v375, %v371
    %vm379 = vcmask 58368
    %v380 = vsel %vm379, %v377, -inf
    %381 = vmax.xlane.f32.xlu0 %v380
    %v382 = vpop.xlane.xlu0 %381
    %v384 = vlaneseq
    %v385 = vshrl.u32 %v384, 7
    %v386 = vsub.s32 0, %v385
    %v387 = vrot.slane %v382, %v386
    %v388 = vlaneseq
    %v389 = vshrl.u32 %v388, 7
    %v390 = vsub.s32 1, %v389
    %v391 = vrot.slane %v382, %v390
    %v394 = vsub.f32 %v360, %v387
    %v395 = vsub.f32 %v363, %v391
    %v396 = vmul.f32 %v394, 1.442695
    %v397 = vpow.pop %v396
    %v398 = vmul.f32 %v395, 1.442695
    %v399 = vpow.pop %v398
    %402 = vset.pattern.permute.xlu0 0
    %403 = vperm.xlu0 %402, %v397
    %v404 = vpop.permute.xlu0 %403
    %405 = vset.pattern.permute.xlu0 0
    %406 = vperm.xlu0 %405, %v399
    %v407 = vpop.permute.xlu0 %406
    %v408 = vlaneseq
    %v409 = vshrl.u32 %v408, 7
    %v410 = vsub.s32 %v367, %v409
    %v411 = vrot.slane %v404, %v410
    %v412 = vlaneseq
    %v413 = vshrl.u32 %v412, 7
    %v414 = vsub.s32 %v367, %v413
    %v415 = vrot.slane %v407, %v414
    %v416 = vsel %vm376, %v415, %v411
    %v418 = vsel %vm379, %v416, 0.0
    %419 = vadd.xlane.f32.xlu0 %v418
    %v420 = vpop.xlane.xlu0 %419
    %v422 = vlaneseq
    %v423 = vshrl.u32 %v422, 7
    %v424 = vsub.s32 0, %v423
    %v425 = vrot.slane %v420, %v424
    %v426 = vlaneseq
    %v427 = vshrl.u32 %v426, 7
    %v428 = vsub.s32 1, %v427
    %v429 = vrot.slane %v420, %v428
    %v432 = vrcp.pop %v425
    %v433 = vmul.f32 %v397, %v432
    %v434 = vrcp.pop %v429
    %v435 = vmul.f32 %v399, %v434
    %437 = vset.pattern.permute.xlu0 0
    %438 = vperm.xlu0 %437, %v433
    %v439 = vpop.permute.xlu0 %438
    %442 = vset.pattern.permute.xlu0 0
    %443 = vperm.xlu0 %442, %v435
    %v444 = vpop.permute.xlu0 %443
    %v446 = vmul.f32 %v439, %v137
    %v447 = vmul.f32 %v444, %v138
    %v448 = vsel %vm146, %v446, 0.0
    %v449 = vrot.slane %v448, 4
    %v450 = vadd.f32 %v448, %v449
    %v451 = vrot.slane %v450, 2
    %v452 = vadd.f32 %v450, %v451
    %v453 = vrot.slane %v452, 1
    %v454 = vadd.f32 %v452, %v453
    %v455 = vsel %vm146, %v447, 0.0
    %v456 = vrot.slane %v455, 4
    %v457 = vadd.f32 %v455, %v456
    %v458 = vrot.slane %v457, 2
    %v459 = vadd.f32 %v457, %v458
    %v460 = vrot.slane %v459, 1
    %v461 = vadd.f32 %v459, %v460
    %v462 = vld [vmem:[#allocation11] sm:$0xff]
    %v463 = vld [vmem:[#allocation11 + $0x8] sm:$0xff]
    %v464 = vld [vmem:[#allocation11 + $0x10] sm:$0xff]
    %v465 = vld [vmem:[#allocation11 + $0x18] sm:$0xff]
    %v466 = vld [vmem:[#allocation13] sm:$0xff]
    %v467 = vld [vmem:[#allocation13 + $0x8] sm:$0xff]
    %vm468 = vcmask 130048
    %v470 = vsel %vm468, %v141, 0
    %472 = vmatprep.subr.mxu0 0.0
    %473 = vmatpush1.msra.mxu0 %v466
    %474 = vmatprep.subr.mxu0 0.0
    %475 = vmatpush1.msra.mxu0 %v467
    %476 = vmatprep.subr.mxu0 0.0
    %477 = vmatpush1.msra.mxu0 0.0
    %478 = vmatprep.subr.mxu0 0.0
    %479 = vmatpush1.msra.mxu0 0.0
    %480 = vmatprep.subr.mxu0 0.0
    %481 = vmatpush1.msra.mxu0 0.0
    %482 = vmatprep.subr.mxu0 0.0
    %483 = vmatpush1.msra.mxu0 0.0
    %484 = vmatprep.subr.mxu0 0.0
    %485 = vmatpush1.msra.mxu0 0.0
    %486 = vmatprep.subr.mxu0 0.0
    %487 = vmatpush1.msra.mxu0 0.0
    %488 = vmatprep.subr.mxu0 0.0
    %489 = vmatpush1.msra.mxu0 0.0
    %490 = vmatprep.subr.mxu0 0.0
    %491 = vmatpush1.msra.mxu0 0.0
    %492 = vmatprep.subr.mxu0 0.0
    %493 = vmatpush1.msra.mxu0 0.0
    %494 = vmatprep.subr.mxu0 0.0
    %495 = vmatpush1.msra.mxu0 0.0
    %496 = vmatprep.subr.mxu0 0.0
    %497 = vmatpush1.msra.mxu0 0.0
    %498 = vmatprep.subr.mxu0 0.0
    %499 = vmatpush1.msra.mxu0 0.0
    %500 = vmatprep.subr.mxu0 0.0
    %501 = vmatpush1.msra.mxu0 0.0
    %502 = vmatprep.subr.mxu0 0.0
    %503 = vmatpush1.msra.mxu0 0.0
    %504 = vmatprep.subr.mxu0 0.0
    %505 = vmatpush1.msra.mxu0 0.0
    %506 = vmatprep.subr.mxu0 0.0
    %507 = vmatpush1.msra.mxu0 0.0
    %508 = vmatprep.subr.mxu0 0.0
    %509 = vmatpush1.msra.mxu0 0.0
    %510 = vmatprep.subr.mxu0 0.0
    %511 = vmatpush1.msra.mxu0 0.0
    %512 = vmatprep.subr.mxu0 0.0
    %513 = vmatpush1.msra.mxu0 0.0
    %514 = vmatprep.subr.mxu0 0.0
    %515 = vmatpush1.msra.mxu0 0.0
    %516 = vmatprep.subr.mxu0 0.0
    %517 = vmatpush1.msra.mxu0 0.0
    %518 = vmatprep.subr.mxu0 0.0
    %519 = vmatpush1.msra.mxu0 0.0
    %520 = vmatprep.subr.mxu0 0.0
    %521 = vmatpush1.msra.mxu0 0.0
    %522 = vmatprep.subr.mxu0 0.0
    %523 = vmatpush1.msra.mxu0 0.0
    %524 = vmatprep.subr.mxu0 0.0
    %525 = vmatpush1.msra.mxu0 0.0
    %526 = vmatprep.subr.mxu0 0.0
    %527 = vmatpush1.msra.mxu0 0.0
    %528 = vmatprep.subr.mxu0 0.0
    %529 = vmatpush1.msra.mxu0 0.0
    %530 = vmatprep.subr.mxu0 0.0
    %531 = vmatpush1.msra.mxu0 0.0
    %532 = vmatprep.subr.mxu0 0.0
    %533 = vmatpush1.msra.mxu0 0.0
    %534 = vmatprep.subr.mxu0 0.0
    %535 = vmatpush1.msra.mxu0 0.0
    %536 = vmatprep.mubr.f32.mxu0 0.0
    %537 = vmatmul.mubr.f32.gmra.mrb[0].mxu0 %v470
    %v538 = vpop.f32.mrb[0].mxu0
    %v539 = vadd.f32 0.0, %v538
    %v540 = vpop.f32.mrb[0].mxu0
    %541 = vdwg.mxu0
    %v544 = vsel %vm376, %v461, %v454
    %v545 = vsel %vm146, %v544, 0
    %547 = vmatprep.subr.mxu0 0.0
    %548 = vmatpush1.msra.mxu0 %v462
    %549 = vmatprep.subr.mxu0 0.0
    %550 = vmatpush1.msra.mxu0 %v463
    %551 = vmatprep.subr.mxu0 0.0
    %552 = vmatpush1.msra.mxu0 %v464
    %553 = vmatprep.subr.mxu0 0.0
    %554 = vmatpush1.msra.mxu0 %v465
    %555 = vmatprep.subr.mxu0 0.0
    %556 = vmatpush1.msra.mxu0 0.0
    %557 = vmatprep.subr.mxu0 0.0
    %558 = vmatpush1.msra.mxu0 0.0
    %559 = vmatprep.subr.mxu0 0.0
    %560 = vmatpush1.msra.mxu0 0.0
    %561 = vmatprep.subr.mxu0 0.0
    %562 = vmatpush1.msra.mxu0 0.0
    %563 = vmatprep.subr.mxu0 0.0
    %564 = vmatpush1.msra.mxu0 0.0
    %565 = vmatprep.subr.mxu0 0.0
    %566 = vmatpush1.msra.mxu0 0.0
    %567 = vmatprep.subr.mxu0 0.0
    %568 = vmatpush1.msra.mxu0 0.0
    %569 = vmatprep.subr.mxu0 0.0
    %570 = vmatpush1.msra.mxu0 0.0
    %571 = vmatprep.subr.mxu0 0.0
    %572 = vmatpush1.msra.mxu0 0.0
    %573 = vmatprep.subr.mxu0 0.0
    %574 = vmatpush1.msra.mxu0 0.0
    %575 = vmatprep.subr.mxu0 0.0
    %576 = vmatpush1.msra.mxu0 0.0
    %577 = vmatprep.subr.mxu0 0.0
    %578 = vmatpush1.msra.mxu0 0.0
    %579 = vmatprep.subr.mxu0 0.0
    %580 = vmatpush1.msra.mxu0 0.0
    %581 = vmatprep.subr.mxu0 0.0
    %582 = vmatpush1.msra.mxu0 0.0
    %583 = vmatprep.subr.mxu0 0.0
    %584 = vmatpush1.msra.mxu0 0.0
    %585 = vmatprep.subr.mxu0 0.0
    %586 = vmatpush1.msra.mxu0 0.0
    %587 = vmatprep.subr.mxu0 0.0
    %588 = vmatpush1.msra.mxu0 0.0
    %589 = vmatprep.subr.mxu0 0.0
    %590 = vmatpush1.msra.mxu0 0.0
    %591 = vmatprep.subr.mxu0 0.0
    %592 = vmatpush1.msra.mxu0 0.0
    %593 = vmatprep.subr.mxu0 0.0
    %594 = vmatpush1.msra.mxu0 0.0
    %595 = vmatprep.subr.mxu0 0.0
    %596 = vmatpush1.msra.mxu0 0.0
    %597 = vmatprep.subr.mxu0 0.0
    %598 = vmatpush1.msra.mxu0 0.0
    %599 = vmatprep.subr.mxu0 0.0
    %600 = vmatpush1.msra.mxu0 0.0
    %601 = vmatprep.subr.mxu0 0.0
    %602 = vmatpush1.msra.mxu0 0.0
    %603 = vmatprep.subr.mxu0 0.0
    %604 = vmatpush1.msra.mxu0 0.0
    %605 = vmatprep.subr.mxu0 0.0
    %606 = vmatpush1.msra.mxu0 0.0
    %607 = vmatprep.subr.mxu0 0.0
    %608 = vmatpush1.msra.mxu0 0.0
    %609 = vmatprep.subr.mxu0 0.0
    %610 = vmatpush1.msra.mxu0 0.0
    %611 = vmatprep.mubr.f32.mxu0 0.0
    %612 = vmatmul.mubr.f32.gmra.mrb[0].mxu0 %v545
    %v613 = vpop.f32.mrb[0].mxu0
    %v614 = vadd.f32 %v539, %v613
    %v615 = vpop.f32.mrb[0].mxu0
    %616 = vdwg.mxu0
    %v617 = vld [vmem:[%s10] sm:$0xff]
    %v618 = vld [vmem:[%s10 + $0x8] sm:$0xff]
    %v619 = vld [vmem:[%s10 + $0x10] sm:$0xff]
    %v620 = vld [vmem:[%s10 + $0x18] sm:$0xff]
    %621 = vmatprep.subr.mxu0 0.0
    %622 = vmatpush1.msra.mxu0 %v617
    %623 = vmatprep.subr.mxu0 0.0
    %624 = vmatpush1.msra.mxu0 %v618
    %625 = vmatprep.subr.mxu0 0.0
    %626 = vmatpush1.msra.mxu0 %v619
    %627 = vmatprep.subr.mxu0 0.0
    %628 = vmatpush1.msra.mxu0 %v620
    %629 = vmatprep.subr.mxu0 0.0
    %630 = vmatpush1.msra.mxu0 0.0
    %631 = vmatprep.subr.mxu0 0.0
    %632 = vmatpush1.msra.mxu0 0.0
    %633 = vmatprep.subr.mxu0 0.0
    %634 = vmatpush1.msra.mxu0 0.0
    %635 = vmatprep.subr.mxu0 0.0
    %636 = vmatpush1.msra.mxu0 0.0
    %637 = vmatprep.subr.mxu0 0.0
    %638 = vmatpush1.msra.mxu0 0.0
    %639 = vmatprep.subr.mxu0 0.0
    %640 = vmatpush1.msra.mxu0 0.0
    %641 = vmatprep.subr.mxu0 0.0
    %642 = vmatpush1.msra.mxu0 0.0
    %643 = vmatprep.subr.mxu0 0.0
    %644 = vmatpush1.msra.mxu0 0.0
    %645 = vmatprep.subr.mxu0 0.0
    %646 = vmatpush1.msra.mxu0 0.0
    %647 = vmatprep.subr.mxu0 0.0
    %648 = vmatpush1.msra.mxu0 0.0
    %649 = vmatprep.subr.mxu0 0.0
    %650 = vmatpush1.msra.mxu0 0.0
    %651 = vmatprep.subr.mxu0 0.0
    %652 = vmatpush1.msra.mxu0 0.0
    %653 = vmatprep.subr.mxu0 0.0
    %654 = vmatpush1.msra.mxu0 0.0
    %655 = vmatprep.subr.mxu0 0.0
    %656 = vmatpush1.msra.mxu0 0.0
    %657 = vmatprep.subr.mxu0 0.0
    %658 = vmatpush1.msra.mxu0 0.0
    %659 = vmatprep.subr.mxu0 0.0
    %660 = vmatpush1.msra.mxu0 0.0
    %661 = vmatprep.subr.mxu0 0.0
    %662 = vmatpush1.msra.mxu0 0.0
    %663 = vmatprep.subr.mxu0 0.0
    %664 = vmatpush1.msra.mxu0 0.0
    %665 = vmatprep.subr.mxu0 0.0
    %666 = vmatpush1.msra.mxu0 0.0
    %667 = vmatprep.subr.mxu0 0.0
    %668 = vmatpush1.msra.mxu0 0.0
    %669 = vmatprep.subr.mxu0 0.0
    %670 = vmatpush1.msra.mxu0 0.0
    %671 = vmatprep.subr.mxu0 0.0
    %672 = vmatpush1.msra.mxu0 0.0
    %673 = vmatprep.subr.mxu0 0.0
    %674 = vmatpush1.msra.mxu0 0.0
    %675 = vmatprep.subr.mxu0 0.0
    %676 = vmatpush1.msra.mxu0 0.0
    %677 = vmatprep.subr.mxu0 0.0
    %678 = vmatpush1.msra.mxu0 0.0
    %679 = vmatprep.subr.mxu0 0.0
    %680 = vmatpush1.msra.mxu0 0.0
    %681 = vmatprep.subr.mxu0 0.0
    %682 = vmatpush1.msra.mxu0 0.0
    %683 = vmatprep.subr.mxu0 0.0
    %684 = vmatpush1.msra.mxu0 0.0
    %685 = vmatprep.mubr.f32.mxu0 0.0
    %686 = vmatmul.mubr.f32.gmra.mrb[0].mxu0 %v240
    %v687 = vpop.f32.mrb[0].mxu0
    %v688 = vadd.f32 0.0, %v687
    %v689 = vpop.f32.mrb[0].mxu0
    %690 = vdwg.mxu0
    %v691 = vadd.f32 %v614, %v688
    %v692 = vld [vmem:[%s11] sm:$0x1]
    %v694 = vlaneseq
    %v695 = vshrl.u32 %v694, 7
    %v696 = vsub.s32 0, %v695
    %v697 = vrot.slane %v692, %v696
    %v699 = vadd.f32 %v691, %v697
    %v700 = vxor.u32 %v699, 2147483648
    %v701 = vmul.f32 %v700, 1.442695
    %v702 = vpow.pop %v701
    %v703 = vadd.f32 %v702, 1.0
    %v704 = vrcp.pop %v703
    %v705 = vmul.f32 1.0, %v704
    %v706 = vtanh.pop %v699
    %708 = vrot.lane.b32.xlu0 %v140, 32
    %v709 = vpop.permute.xlu0 %708
    %v711 = vmul.f32 %v705, %v709
    %713 = vrot.lane.b32.xlu0 %v706, 64
    %v714 = vpop.permute.xlu0 %713
    %v716 = vmul.f32 %v705, %v714
    %718 = vrot.lane.b32.xlu0 %v716, 32
    %v719 = vpop.permute.xlu0 %718
    %v721 = vadd.f32 %v711, %v719
    %v722 = vtanh.pop %v721
    %724 = vrot.lane.b32.xlu0 %v722, 64
    %v725 = vpop.permute.xlu0 %724
    %v727 = vmul.f32 %v705, %v725
    %729 = vrot.lane.b32.xlu0 %v727, 32
    %v730 = vpop.permute.xlu0 %729
    %vm732 = vcmask 254976
    %733 = vst.msk [vmem:[#allocation14] sm:$0x3] %vm732, %v730
    %735 = vrot.lane.b32.xlu0 %v721, 96
    %v736 = vpop.permute.xlu0 %735
    %738 = vst.msk [vmem:[#allocation15] sm:$0x3] %vm732, %v736
    %v739 = vlaneseq
    %v740 = vshrl.u32 %v739, 7
    %v741 = vsub.s32 %v367, %v740
    %v742 = vrot.slane %v439, %v741
    %v743 = vlaneseq
    %v744 = vshrl.u32 %v743, 7
    %v745 = vsub.s32 %v367, %v744
    %v746 = vrot.slane %v444, %v745
    %v747 = vsel %vm376, %v746, %v742
    %749 = vst.msk [vmem:[#allocation17] sm:$0x3] %vm379, %v747
    // Predicated region
    $region78: #{tpu_custom_call.1} parent=1 // pred_check
      _
    $region79: #{tpu_custom_call.1} parent=1 // pred_check_branch
      %751 = sbr.rel (0) target = $region81
    $region80: #{tpu_custom_call.1} parent=1 // pred_region
      %s753 = ssub.s32 32, 32
      %754 = vsyncadd [#allocation4], %s753
      %s756 = sshll.u32 [#allocation14], 4
      %s757 = int_to_ptr.vmem [resolvable:$true] %s756
      %759 = dma.vmem_to_hbm [thread:$0]  %s757, 32, %s12, [#allocation4]
    $region81: #{tpu_custom_call.1} parent=1 // pred_fallthru
      _
    // Predicated region
    $region82: #{tpu_custom_call.1} parent=1 // pred_check
      _
    $region83: #{tpu_custom_call.1} parent=1 // pred_check_branch
      %761 = sbr.rel (0) target = $region85
    $region84: #{tpu_custom_call.1} parent=1 // pred_region
      %s763 = ssub.s32 32, 32
      %764 = vsyncadd [#allocation16], %s763
      %s766 = sshll.u32 [#allocation15], 4
      %s767 = int_to_ptr.vmem [resolvable:$true] %s766
      %769 = dma.vmem_to_hbm [thread:$0]  %s767, 32, %s13, [#allocation16]
    $region85: #{tpu_custom_call.1} parent=1 // pred_fallthru
      _
    // Predicated region
    $region86: #{tpu_custom_call.1} parent=1 // pred_check
      _
    $region87: #{tpu_custom_call.1} parent=1 // pred_check_branch
      %771 = sbr.rel (0) target = $region89
    $region88: #{tpu_custom_call.1} parent=1 // pred_region
      %s773 = ssub.s32 32, 32
      %774 = vsyncadd [#allocation16], %s773
      %s776 = sshll.u32 [#allocation17], 4
      %s777 = int_to_ptr.vmem [resolvable:$true] %s776
      %779 = dma.vmem_to_hbm [thread:$0]  %s777, 32, %s14, [#allocation16]
    $region89: #{tpu_custom_call.1} parent=1 // pred_fallthru
      _
    // Predicated region
    $region90: #{tpu_custom_call.1} parent=1 // pred_check
      _
    $region91: #{tpu_custom_call.1} parent=1 // pred_check_branch
      %781 = sbr.rel (0) target = $region93
    $region92: #{tpu_custom_call.1} parent=1 // pred_region
      %782 = dma.done [#allocation4], 32
    $region93: #{tpu_custom_call.1} parent=1 // pred_fallthru
      _
    // Predicated region
    $region94: #{tpu_custom_call.1} parent=1 // pred_check
      _
    $region95: #{tpu_custom_call.1} parent=1 // pred_check_branch
      %784 = sbr.rel (0) target = $region97
    $region96: #{tpu_custom_call.1} parent=1 // pred_region
      %785 = dma.done [#allocation16], 32
    $region97: #{tpu_custom_call.1} parent=1 // pred_fallthru
      _
    // Predicated region
    $region98: #{tpu_custom_call.1} parent=1 // pred_check
      _
    $region99: #{tpu_custom_call.1} parent=1 // pred_check_branch
      %787 = sbr.rel (0) target = $region101
    $region100: #{tpu_custom_call.1} parent=1 // pred_region
      %788 = dma.done [#allocation16], 32
    $region101: #{tpu_custom_call.1} parent=1 // pred_fallthru
      _
    %789 = vsyncpa [#allocation3], 1
    %790 = vsyncpa [#allocation6], 1
    %791 = vsyncpa [#allocation9], 1
    %792 = vsyncpa [#allocation12], 1
    %793 = vsyncpa [#allocation4], 1
    %794 = vsyncpa [#allocation16], 1

</llo_original>
